<compile_context>
chip_gen: v6e
topology: v6e:2x2x1
jax: 0.10.0
libtpu: 0.0.40
codegen_flags: <defaults>
</compile_context>

<pallas_src>
import functools
import math

import jax
import jax.numpy as jnp
from jax.experimental import pallas as pl
from jax.experimental.pallas import tpu as pltpu


def _round_up(n, m):
    return ((n + m - 1) // m) * m


# ----------------------------------------------------------------------------
# Fused SAGE layer kernel
#   grid = (i: row tiles of adj/out, k: col tiles of adj == row tiles of x)
#   o[i] = sum_k adj[i,k] @ (x[k] @ W_neigh)  +  x[i] @ W_self + bias   (; ReLU)
# The output block index is constant across k, so o_ref is resident in VMEM and
# is used directly as the accumulator.
# ----------------------------------------------------------------------------
def _sage_layer_kernel(adj_ref, xk_ref, xi_ref, wn_ref, ws_ref, b_ref, o_ref,
                       *, relu):
    k = pl.program_id(1)
    nk = pl.num_programs(1)

    @pl.when(k == 0)
    def _():
        # initialize the resident output tile with the self term + bias
        o_ref[...] = (
            jnp.dot(xi_ref[...], ws_ref[...],
                    preferred_element_type=jnp.float32)
            + b_ref[...]
        )

    # neighbor feature transform for this k tile (recompute per row tile; cheap
    # vs. the adj DMA which dominates), then aggregate with the adj tile.
    h = jnp.dot(xk_ref[...], wn_ref[...], preferred_element_type=jnp.float32)
    o_ref[...] += jnp.dot(adj_ref[...], h.astype(adj_ref.dtype),
                          preferred_element_type=jnp.float32)

    if relu:
        @pl.when(k == nk - 1)
        def _():
            o_ref[...] = jnp.maximum(o_ref[...], 0.0)


def sage_layer(adj, x, w_self, w_neigh, bias, *, relu, tm, tk):
    """One fused SAGE layer.  adj is (Np, Np); x is (Np, F_in); Np % tm == Np % tk == 0."""
    Np = adj.shape[0]
    assert Np % tm == 0 and Np % tk == 0, (Np, tm, tk)
    F_in = x.shape[1]
    F_out = w_self.shape[1]
    grid = (Np // tm, Np // tk)

    flops = 2 * Np * Np * F_out + 2 * Np * F_in * F_out * (grid[0] + 1)
    bytes_accessed = (
        Np * Np * adj.dtype.itemsize                    # adj stream (dominant)
        + (grid[0] + 1) * Np * F_in * x.dtype.itemsize  # x re-read per row tile + self
        + Np * F_out * 4                                # output write
        + 2 * F_in * F_out * 4 + F_out * 4              # weights + bias
    )

    kern = functools.partial(_sage_layer_kernel, relu=relu)
    return pl.pallas_call(
        kern,
        out_shape=jax.ShapeDtypeStruct((Np, F_out), jnp.float32),
        grid_spec=pltpu.PrefetchScalarGridSpec(
            num_scalar_prefetch=0,
            grid=grid,
            in_specs=[
                pl.BlockSpec((tm, tk), lambda i, k: (i, k)),       # adj tile
                pl.BlockSpec((tk, F_in), lambda i, k: (k, 0)),     # x (neighbor rows)
                pl.BlockSpec((tm, F_in), lambda i, k: (i, 0)),     # x (self rows)
                pl.BlockSpec((F_in, F_out), lambda i, k: (0, 0)),  # W_neigh (resident)
                pl.BlockSpec((F_in, F_out), lambda i, k: (0, 0)),  # W_self  (resident)
                pl.BlockSpec((1, F_out), lambda i, k: (0, 0)),     # bias
            ],
            out_specs=pl.BlockSpec((tm, F_out), lambda i, k: (i, 0)),
        ),
        compiler_params=pltpu.CompilerParams(
            dimension_semantics=("parallel", "arbitrary")),
        cost_estimate=pl.CostEstimate(
            flops=flops, transcendentals=0, bytes_accessed=bytes_accessed),
    )(adj, x, x, w_neigh, w_self, bias.reshape(1, F_out))


# ----------------------------------------------------------------------------
# SAGEInference forward
# ----------------------------------------------------------------------------
def _pick_tiles(n, tm, tk):
    # keep both tile dims lane-aligned (multiples of 128) and no larger than the
    # (rounded-up) problem size; pad N to a common multiple of both tiles.
    tm = _round_up(min(tm, n), 128)
    tk = _round_up(min(tk, n), 128)
    n_pad = _round_up(n, math.lcm(tm, tk))
    return tm, tk, n_pad


def sage_inference(x, adj, weights, *, tm=512, tk=512, adj_dtype=jnp.bfloat16):
    """weights: list of (weight (2*F_in, F_out), bias (F_out,)) tuples."""
    n = x.shape[0]
    tm_, tk_, n_pad = _pick_tiles(n, tm, tk)
    pad = n_pad - n

    x_p = jnp.pad(x, ((0, pad), (0, 0))) if pad else x
    adj_p = jnp.pad(adj, ((0, pad), (0, pad))) if pad else adj
    adj_p = adj_p.astype(adj_dtype)   # halve the dominant N^2 HBM stream

    out = x_p.astype(jnp.float32)
    n_layers = len(weights)
    for i, (weight, bias) in enumerate(weights):
        half = weight.shape[0] // 2
        w_self = weight[:half]        # out @ weight[:half]
        w_neigh = weight[half:]       # adj @ out @ weight[half:]
        out = sage_layer(adj_p, out, w_self, w_neigh, bias,
                         relu=(i < n_layers - 1), tm=tm_, tk=tk_)
    return out[:n] if pad else out


# ----------------------------------------------------------------------------
# Reference in plain JAX (mirrors the PyTorch/numpy forward exactly, f32)
# ----------------------------------------------------------------------------
def sage_reference(x, adj, weights):
    mm = functools.partial(jnp.matmul, precision=jax.lax.Precision.HIGHEST)
    out = x
    for i, (weight, bias) in enumerate(weights):
        half = weight.shape[0] // 2
        tmp = mm(mm(adj, out), weight[half:])
        out = tmp + mm(out, weight[:half]) + bias
        out = jnp.maximum(out, 0.0) if i < len(weights) - 1 else out
    return out


if __name__ == "__main__":
    key = jax.random.PRNGKey(0)

    N = 300            # deliberately NOT a multiple of the tile sizes
    in_dim = 32
    hidden = 64
    out_dim = 16
    layer_dims = [(in_dim, hidden), (hidden, hidden), (hidden, out_dim)]

    # deterministic synthetic parameters
    weights = []
    for (fi, fo) in layer_dims:
        key, kw, kb = jax.random.split(key, 3)
        w = jax.random.normal(kw, (2 * fi, fo), dtype=jnp.float32) * 0.1
        b = jax.random.normal(kb, (fo,), dtype=jnp.float32) * 0.1
        weights.append((w, b))

    # deterministic inputs: sparse-ish row-normalized adjacency (dense repr.)
    key, kx, ka = jax.random.split(key, 3)
    x = jax.random.normal(kx, (N, in_dim), dtype=jnp.float32)
    adj_raw = (jax.random.uniform(ka, (N, N)) < 0.05).astype(jnp.float32)
    adj = adj_raw / jnp.maximum(adj_raw.sum(axis=1, keepdims=True), 1.0)

    ref = sage_reference(x, adj, weights)

    # Run 1: small tiles -> multi-step (3x3) grid, bf16 adjacency (prod config).
    out = sage_inference(x, adj, weights, tm=128, tk=128, adj_dtype=jnp.bfloat16)
    out = jax.block_until_ready(out)
    assert out.shape == (N, out_dim)
    err = float(jnp.max(jnp.abs(out - ref)))
    assert jnp.allclose(out, ref, atol=2e-2, rtol=2e-2), (
        f"bf16-adj mismatch vs reference (max abs err {err})")

    # Run 2: default (large) tiles, f32 adjacency -> tight structural check.
    out32 = sage_inference(x, adj, weights, adj_dtype=jnp.float32)
    out32 = jax.block_until_ready(out32)
    err32 = float(jnp.max(jnp.abs(out32 - ref)))
    assert jnp.allclose(out32, ref, atol=5e-3, rtol=5e-3), (
        f"f32-adj mismatch vs reference (max abs err {err32})")

    print("KERNEL_OK")
</pallas_src>

<mosaic_0001>
module attributes {stable_mosaic.version = 11 : i64} {
  func.func @_sage_layer_kernel(%arg0: i32, %arg1: i32, %arg2: memref<128x128xbf16, #tpu.memory_space<vmem>>, %arg3: memref<128x32xf32, #tpu.memory_space<vmem>>, %arg4: memref<128x32xf32, #tpu.memory_space<vmem>>, %arg5: memref<32x64xf32, #tpu.memory_space<vmem>>, %arg6: memref<32x64xf32, #tpu.memory_space<vmem>>, %arg7: memref<1x64xf32, #tpu.memory_space<vmem>>, %arg8: memref<128x64xf32, #tpu.memory_space<vmem>>) attributes {dimension_semantics = [#tpu.dimension_semantics<parallel>, #tpu.dimension_semantics<arbitrary>], iteration_bounds = array<i64: 3, 3>, scalar_prefetch = 0 : i64, scratch_operands = 0 : i64, tpu.core_type = #tpu.core_type<tc>, window_params = [{transform_indices = @transform_0, window_bounds = array<i64: 128, 128>}, {transform_indices = @transform_1, window_bounds = array<i64: 128, 32>}, {transform_indices = @transform_2, window_bounds = array<i64: 128, 32>}, {pipeline_mode = #tpu.pipeline_mode<synchronous>, transform_indices = @transform_3, window_bounds = array<i64: 32, 64>}, {pipeline_mode = #tpu.pipeline_mode<synchronous>, transform_indices = @transform_4, window_bounds = array<i64: 32, 64>}, {pipeline_mode = #tpu.pipeline_mode<synchronous>, transform_indices = @transform_5, window_bounds = array<i64: 1, 64>}, {transform_indices = @transform_6, window_bounds = array<i64: 128, 64>}]} {
    %c0_i32 = arith.constant 0 : i32
    %0 = arith.cmpi eq, %arg1, %c0_i32 : i32
    %1 = arith.extui %0 : i1 to i32
    %c0_i32_0 = arith.constant 0 : i32
    %2 = arith.cmpi ne, %1, %c0_i32_0 : i32
    scf.if %2 {
      %c0_12 = arith.constant 0 : index
      %c0_13 = arith.constant 0 : index
      %15 = vector.load %arg4[%c0_12, %c0_13] : memref<128x32xf32, #tpu.memory_space<vmem>>, vector<128x32xf32>
      %c0_14 = arith.constant 0 : index
      %c0_15 = arith.constant 0 : index
      %16 = vector.load %arg6[%c0_14, %c0_15] : memref<32x64xf32, #tpu.memory_space<vmem>>, vector<32x64xf32>
      %cst_16 = arith.constant dense<0.000000e+00> : vector<128x64xf32>
      %17 = tpu.matmul %15, %16, %cst_16 {dimension_numbers = #tpu.dot_dimension_numbers<[1], [0], [0], [1], [0, 0, 1, 1], [], []>} : vector<128x32xf32>, vector<32x64xf32>, vector<128x64xf32> -> vector<128x64xf32>
      %c0_17 = arith.constant 0 : index
      %c0_18 = arith.constant 0 : index
      %18 = vector.load %arg7[%c0_17, %c0_18] : memref<1x64xf32, #tpu.memory_space<vmem>>, vector<1x64xf32>
      %19 = vector.broadcast %18 : vector<1x64xf32> to vector<128x64xf32>
      %20 = arith.addf %17, %19 : vector<128x64xf32>
      %c0_19 = arith.constant 0 : index
      %c0_20 = arith.constant 0 : index
      %21 = vector.load %arg8[%c0_19, %c0_20] : memref<128x64xf32, #tpu.memory_space<vmem>>, vector<128x64xf32>
      tpu.vector_store %arg8[%c0_19, %c0_20], %20 {strides = array<i32>} : memref<128x64xf32, #tpu.memory_space<vmem>>, vector<128x64xf32>,
    } else {
    }
    %c0 = arith.constant 0 : index
    %c0_1 = arith.constant 0 : index
    %3 = vector.load %arg3[%c0, %c0_1] : memref<128x32xf32, #tpu.memory_space<vmem>>, vector<128x32xf32>
    %c0_2 = arith.constant 0 : index
    %c0_3 = arith.constant 0 : index
    %4 = vector.load %arg5[%c0_2, %c0_3] : memref<32x64xf32, #tpu.memory_space<vmem>>, vector<32x64xf32>
    %cst = arith.constant dense<0.000000e+00> : vector<128x64xf32>
    %5 = tpu.matmul %3, %4, %cst {dimension_numbers = #tpu.dot_dimension_numbers<[1], [0], [0], [1], [0, 0, 1, 1], [], []>} : vector<128x32xf32>, vector<32x64xf32>, vector<128x64xf32> -> vector<128x64xf32>
    %c0_4 = arith.constant 0 : index
    %c0_5 = arith.constant 0 : index
    %6 = vector.load %arg8[%c0_4, %c0_5] : memref<128x64xf32, #tpu.memory_space<vmem>>, vector<128x64xf32>
    %c0_6 = arith.constant 0 : index
    %c0_7 = arith.constant 0 : index
    %7 = vector.load %arg2[%c0_6, %c0_7] : memref<128x128xbf16, #tpu.memory_space<vmem>>, vector<128x128xbf16>
    %8 = arith.truncf %5 : vector<128x64xf32> to vector<128x64xbf16>
    %cst_8 = arith.constant dense<0.000000e+00> : vector<128x64xf32>
    %9 = tpu.matmul %7, %8, %cst_8 {dimension_numbers = #tpu.dot_dimension_numbers<[1], [0], [0], [1], [0, 0, 1, 1], [], []>} : vector<128x128xbf16>, vector<128x64xbf16>, vector<128x64xf32> -> vector<128x64xf32>
    %10 = arith.addf %6, %9 : vector<128x64xf32>
    %c0_9 = arith.constant 0 : index
    %c0_10 = arith.constant 0 : index
    %11 = vector.load %arg8[%c0_9, %c0_10] : memref<128x64xf32, #tpu.memory_space<vmem>>, vector<128x64xf32>
    tpu.vector_store %arg8[%c0_9, %c0_10], %10 {strides = array<i32>} : memref<128x64xf32, #tpu.memory_space<vmem>>, vector<128x64xf32>,
    %c2_i32 = arith.constant 2 : i32
    %12 = arith.cmpi eq, %arg1, %c2_i32 : i32
    %13 = arith.extui %12 : i1 to i32
    %c0_i32_11 = arith.constant 0 : i32
    %14 = arith.cmpi ne, %13, %c0_i32_11 : i32
    scf.if %14 {
      %c0_12 = arith.constant 0 : index
      %c0_13 = arith.constant 0 : index
      %15 = vector.load %arg8[%c0_12, %c0_13] : memref<128x64xf32, #tpu.memory_space<vmem>>, vector<128x64xf32>
      %cst_14 = arith.constant 0.000000e+00 : f32
      %16 = vector.broadcast %cst_14 : f32 to vector<128x64xf32>
      %17 = arith.maximumf %15, %16 : vector<128x64xf32>
      %c0_15 = arith.constant 0 : index
      %c0_16 = arith.constant 0 : index
      %18 = vector.load %arg8[%c0_15, %c0_16] : memref<128x64xf32, #tpu.memory_space<vmem>>, vector<128x64xf32>
      tpu.vector_store %arg8[%c0_15, %c0_16], %17 {strides = array<i32>} : memref<128x64xf32, #tpu.memory_space<vmem>>, vector<128x64xf32>,
    } else {
    }
    return
  }
  func.func @transform_0(%arg0: i32, %arg1: i32) -> (i32, i32) {
    %c0_i32 = arith.constant 0 : i32
    return %arg0, %arg1 : i32, i32
  }
  func.func @transform_1(%arg0: i32, %arg1: i32) -> (i32, i32) {
    %c0_i32 = arith.constant 0 : i32
    %c0_i32_0 = arith.constant 0 : i32
    return %arg1, %c0_i32 : i32, i32
  }
  func.func @transform_2(%arg0: i32, %arg1: i32) -> (i32, i32) {
    %c0_i32 = arith.constant 0 : i32
    %c0_i32_0 = arith.constant 0 : i32
    return %arg0, %c0_i32 : i32, i32
  }
  func.func @transform_3(%arg0: i32, %arg1: i32) -> (i32, i32) {
    %c0_i32 = arith.constant 0 : i32
    %c0_i32_0 = arith.constant 0 : i32
    %c0_i32_1 = arith.constant 0 : i32
    return %c0_i32, %c0_i32_0 : i32, i32
  }
  func.func @transform_4(%arg0: i32, %arg1: i32) -> (i32, i32) {
    %c0_i32 = arith.constant 0 : i32
    %c0_i32_0 = arith.constant 0 : i32
    %c0_i32_1 = arith.constant 0 : i32
    return %c0_i32, %c0_i32_0 : i32, i32
  }
  func.func @transform_5(%arg0: i32, %arg1: i32) -> (i32, i32) {
    %c0_i32 = arith.constant 0 : i32
    %c0_i32_0 = arith.constant 0 : i32
    %c0_i32_1 = arith.constant 0 : i32
    return %c0_i32, %c0_i32_0 : i32, i32
  }
  func.func @transform_6(%arg0: i32, %arg1: i32) -> (i32, i32) {
    %c0_i32 = arith.constant 0 : i32
    %c0_i32_0 = arith.constant 0 : i32
    return %arg0, %c0_i32 : i32, i32
  }
}

</mosaic_0001>

<llo_original>
// kernel: tpu_custom_call.1
$region0: #{tpu_custom_call.1}
  #allocation0 [shape = 'u32[]', space=smem, size = 0x4, offset = 0x4, fixed_abs, tag = 'smem constant byte address 0x4 - core index']
  #allocation1 [shape = 'u32[144,128]{1,0:T(1,128)}', space=vmem, size = 0x12000, scoped, tag = 'internal scratch']
  %s0 = inlined_call_operand.vmem [shape: bf16[384,384], index: 0, kind: input, shape index: {}]
  %s1 = inlined_call_operand.vmem [shape: f32[384,32], index: 1, kind: input, shape index: {}]
  %s2 = inlined_call_operand.vmem [shape: f32[384,32], index: 2, kind: input, shape index: {}]
  %s3 = inlined_call_operand.vmem [shape: f32[32,64], index: 3, kind: input, shape index: {}]
  %s4 = inlined_call_operand.vmem [shape: f32[32,64], index: 4, kind: input, shape index: {}]
  %s5 = inlined_call_operand.vmem [shape: f32[1,64], index: 5, kind: input, shape index: {}]
  %s6 = inlined_call_operand.vmem [shape: f32[384,64], index: 6, kind: output, shape index: {}]
  %s7 = sld [smem:[#allocation0]]
  $region106: #{tpu_custom_call.1} parent=0
    _
  %s9 = ssub.s32 1, %s7
  %s10 = scalar_select 0, %s9, %s7
  $region1: #{tpu_custom_call.1} parent=0
    #allocation2 [shape = 'u8[65536]{0}', space=vmem, size = 0x10000, scoped, tag = 'input window, operand 0']
    loop: start=0, step=1, limit=11
    $region2: #{tpu_custom_call.1} parent=1 // loop_pre_header
      _
    $region3: #{tpu_custom_call.1} parent=1 // loop_header
      %s12 = sphi 0, %s16
      %p13 = scmp.ge.s32.totalorder %s12, 11
      %s19 = sphi 0, %s31
      %s20 = sphi 0, %s27
      %s21 = sphi 0, %s19
      %s22 = sphi 0, %s20
      %s23 = sphi 0, %s21
      %s24 = sphi 0, %s22
      %s36 = sphi 0, %s38
      %s39 = sphi 0, %s36
      %s40 = sphi 0, %s39
      %s56 = sphi 0, %s40
      %s62 = sphi 0, %s64
      %s65 = sphi 0, %s62
      %s66 = sphi 0, %s65
      %s82 = sphi 0, %s66
      %s88 = sphi 0, %s90
      %s91 = sphi 0, %s88
      %s92 = sphi 0, %s91
      %s108 = sphi 0, %s92
      %s112 = sphi 0, %s112
      %s114 = sphi 0, %s112
      %s115 = sphi 0, %s114
      %s129 = sphi 0, %s115
      %s133 = sphi 0, %s133
      %s135 = sphi 0, %s133
      %s136 = sphi 0, %s135
      %s150 = sphi 0, %s136
      %s154 = sphi 0, %s154
      %s156 = sphi 0, %s154
      %s157 = sphi 0, %s156
      %s171 = sphi 0, %s157
      %s177 = sphi 0, %s179
      %s180 = sphi 0, %s177
      %s181 = sphi 0, %s180
      %s197 = sphi 0, %s181
    $region4: #{tpu_custom_call.1} parent=1 // loop_header_branch
      %15 = sbr.rel (%p13) target = $region8
    $region5: #{tpu_custom_call.1} parent=1 // loop_body
      %s17 = ssub.s32 %s12, 1
      %s18 = ssub.s32 %s12, 2
      %s25 = sadd.s32 1, %s20
      %p26 = scmp.ge.s32.totalorder %s25, 3
      %s27 = scalar_select %p26, 0, %s25
      %s28 = sadd.s32 1, %s19
      %s29 = scalar_select %p26, %s28, %s19
      %p30 = scmp.ge.s32.totalorder %s29, 3
      %s31 = scalar_select %p30, 0, %s29
      %s32 = ssub.s32 %s19, %s31
      %s33 = ssub.s32 %s20, %s27
      %s34 = sor.u32 %s32, %s33
      %p35 = scmp.eq.s32.totalorder %s34, 0
      %s37 = sadd.s32 %s36, 1
      %s38 = scalar_select %p35, %s36, %s37
      %p41 = pneg %p35
      %p42 = scmp.eq.s32.totalorder %s12, 8
      %p43 = por %p41, %p42
      %p44 = scmp.ne.s32.totalorder %s36, %s39
      %p45 = scmp.eq.s32.totalorder %s12, 0
      %p46 = por %p44, %p45
      %p47 = scmp.ne.s32.totalorder %s36, %s39
      %p48 = scmp.eq.s32.totalorder %s17, 8
      %p49 = por %p47, %p48
      %p50 = scmp.ne.s32.totalorder %s39, %s40
      %p51 = scmp.eq.s32.totalorder %s17, 0
      %p52 = por %p50, %p51
      %p53 = scmp.ne.s32.totalorder %s39, %s40
      %p54 = scmp.eq.s32.totalorder %s18, 8
      %p55 = por %p53, %p54
      %p57 = scmp.ne.s32.totalorder %s40, %s56
      %p58 = scmp.eq.s32.totalorder %s18, 0
      %p59 = por %p57, %p58
      %s60 = ssub.s32 %s20, %s27
      %p61 = scmp.eq.s32.totalorder %s60, 0
      %s63 = sadd.s32 %s62, 1
      %s64 = scalar_select %p61, %s62, %s63
      %p67 = pneg %p61
      %p68 = scmp.eq.s32.totalorder %s12, 8
      %p69 = por %p67, %p68
      %p70 = scmp.ne.s32.totalorder %s62, %s65
      %p71 = scmp.eq.s32.totalorder %s12, 0
      %p72 = por %p70, %p71
      %p73 = scmp.ne.s32.totalorder %s62, %s65
      %p74 = scmp.eq.s32.totalorder %s17, 8
      %p75 = por %p73, %p74
      %p76 = scmp.ne.s32.totalorder %s65, %s66
      %p77 = scmp.eq.s32.totalorder %s17, 0
      %p78 = por %p76, %p77
      %p79 = scmp.ne.s32.totalorder %s65, %s66
      %p80 = scmp.eq.s32.totalorder %s18, 8
      %p81 = por %p79, %p80
      %p83 = scmp.ne.s32.totalorder %s66, %s82
      %p84 = scmp.eq.s32.totalorder %s18, 0
      %p85 = por %p83, %p84
      %s86 = ssub.s32 %s19, %s31
      %p87 = scmp.eq.s32.totalorder %s86, 0
      %s89 = sadd.s32 %s88, 1
      %s90 = scalar_select %p87, %s88, %s89
      %p93 = pneg %p87
      %p94 = scmp.eq.s32.totalorder %s12, 8
      %p95 = por %p93, %p94
      %p96 = scmp.ne.s32.totalorder %s88, %s91
      %p97 = scmp.eq.s32.totalorder %s12, 0
      %p98 = por %p96, %p97
      %p99 = scmp.ne.s32.totalorder %s88, %s91
      %p100 = scmp.eq.s32.totalorder %s17, 8
      %p101 = por %p99, %p100
      %p102 = scmp.ne.s32.totalorder %s91, %s92
      %p103 = scmp.eq.s32.totalorder %s17, 0
      %p104 = por %p102, %p103
      %p105 = scmp.ne.s32.totalorder %s91, %s92
      %p106 = scmp.eq.s32.totalorder %s18, 8
      %p107 = por %p105, %p106
      %p109 = scmp.ne.s32.totalorder %s92, %s108
      %p110 = scmp.eq.s32.totalorder %s18, 0
      %p111 = por %p109, %p110
      %s113 = sadd.s32 %s112, 1
      %p116 = scmp.eq.s32.totalorder %s12, 8
      %p117 = scmp.ne.s32.totalorder %s112, %s114
      %p118 = scmp.eq.s32.totalorder %s12, 0
      %p119 = por %p117, %p118
      %p120 = scmp.ne.s32.totalorder %s112, %s114
      %p121 = scmp.eq.s32.totalorder %s17, 8
      %p122 = por %p120, %p121
      %p123 = scmp.ne.s32.totalorder %s114, %s115
      %p124 = scmp.eq.s32.totalorder %s17, 0
      %p125 = por %p123, %p124
      %p126 = scmp.ne.s32.totalorder %s114, %s115
      %p127 = scmp.eq.s32.totalorder %s18, 8
      %p128 = por %p126, %p127
      %p130 = scmp.ne.s32.totalorder %s115, %s129
      %p131 = scmp.eq.s32.totalorder %s18, 0
      %p132 = por %p130, %p131
      %s134 = sadd.s32 %s133, 1
      %p137 = scmp.eq.s32.totalorder %s12, 8
      %p138 = scmp.ne.s32.totalorder %s133, %s135
      %p139 = scmp.eq.s32.totalorder %s12, 0
      %p140 = por %p138, %p139
      %p141 = scmp.ne.s32.totalorder %s133, %s135
      %p142 = scmp.eq.s32.totalorder %s17, 8
      %p143 = por %p141, %p142
      %p144 = scmp.ne.s32.totalorder %s135, %s136
      %p145 = scmp.eq.s32.totalorder %s17, 0
      %p146 = por %p144, %p145
      %p147 = scmp.ne.s32.totalorder %s135, %s136
      %p148 = scmp.eq.s32.totalorder %s18, 8
      %p149 = por %p147, %p148
      %p151 = scmp.ne.s32.totalorder %s136, %s150
      %p152 = scmp.eq.s32.totalorder %s18, 0
      %p153 = por %p151, %p152
      %s155 = sadd.s32 %s154, 1
      %p158 = scmp.eq.s32.totalorder %s12, 8
      %p159 = scmp.ne.s32.totalorder %s154, %s156
      %p160 = scmp.eq.s32.totalorder %s12, 0
      %p161 = por %p159, %p160
      %p162 = scmp.ne.s32.totalorder %s154, %s156
      %p163 = scmp.eq.s32.totalorder %s17, 8
      %p164 = por %p162, %p163
      %p165 = scmp.ne.s32.totalorder %s156, %s157
      %p166 = scmp.eq.s32.totalorder %s17, 0
      %p167 = por %p165, %p166
      %p168 = scmp.ne.s32.totalorder %s156, %s157
      %p169 = scmp.eq.s32.totalorder %s18, 8
      %p170 = por %p168, %p169
      %p172 = scmp.ne.s32.totalorder %s157, %s171
      %p173 = scmp.eq.s32.totalorder %s18, 0
      %p174 = por %p172, %p173
      %s175 = ssub.s32 %s19, %s31
      %p176 = scmp.eq.s32.totalorder %s175, 0
      %s178 = sadd.s32 %s177, 1
      %s179 = scalar_select %p176, %s177, %s178
      %p182 = pneg %p176
      %p183 = scmp.eq.s32.totalorder %s12, 8
      %p184 = por %p182, %p183
      %p185 = scmp.ne.s32.totalorder %s177, %s180
      %p186 = scmp.eq.s32.totalorder %s12, 0
      %p187 = por %p185, %p186
      %p188 = scmp.ne.s32.totalorder %s177, %s180
      %p189 = scmp.eq.s32.totalorder %s17, 8
      %p190 = por %p188, %p189
      %p191 = scmp.ne.s32.totalorder %s180, %s181
      %p192 = scmp.eq.s32.totalorder %s17, 0
      %p193 = por %p191, %p192
      %p194 = scmp.ne.s32.totalorder %s180, %s181
      %p195 = scmp.eq.s32.totalorder %s18, 8
      %p196 = por %p194, %p195
      %p198 = scmp.ne.s32.totalorder %s181, %s197
      %p199 = scmp.eq.s32.totalorder %s18, 0
      %p200 = por %p198, %p199
      %p201 = scmp.le.s32.totalorder 1, %s12
      %p202 = scmp.lt.s32.totalorder %s12, 10
      %p203 = pnand %p201, %p202
      %p204 = pneg %p203
      // Predicated region
      $region9: #{tpu_custom_call.1} parent=5 // pred_check
        _
      $region10: #{tpu_custom_call.1} parent=5 // pred_check_branch
        %206 = sbr.rel (%p203) target = $region12
      $region11: #{tpu_custom_call.1} parent=5 // pred_region
        %s207 = ssub.s32 %s12, 1
        // Predicated region
        $region13: #{tpu_custom_call.1} parent=11 // pred_check
          %p208 = pneg %p125
        $region14: #{tpu_custom_call.1} parent=11 // pred_check_branch
          %210 = sbr.rel (%p208) target = $region16
        $region15: #{tpu_custom_call.1} parent=11 // pred_region
          _
        $region16: #{tpu_custom_call.1} parent=11 // pred_fallthru
          _
        // Predicated region
        $region17: #{tpu_custom_call.1} parent=11 // pred_check
          %p211 = pneg %p146
        $region18: #{tpu_custom_call.1} parent=11 // pred_check_branch
          %213 = sbr.rel (%p211) target = $region20
        $region19: #{tpu_custom_call.1} parent=11 // pred_region
          _
        $region20: #{tpu_custom_call.1} parent=11 // pred_fallthru
          _
        // Predicated region
        $region21: #{tpu_custom_call.1} parent=11 // pred_check
          %p214 = pneg %p167
        $region22: #{tpu_custom_call.1} parent=11 // pred_check_branch
          %216 = sbr.rel (%p214) target = $region24
        $region23: #{tpu_custom_call.1} parent=11 // pred_region
          _
        $region24: #{tpu_custom_call.1} parent=11 // pred_fallthru
          _
      $region12: #{tpu_custom_call.1} parent=5 // pred_fallthru
        _
      %p217 = scmp.lt.s32.totalorder %s12, 9
      // Predicated region
      $region25: #{tpu_custom_call.1} parent=5 // pred_check
        %p218 = pneg %p217
      $region26: #{tpu_custom_call.1} parent=5 // pred_check_branch
        %220 = sbr.rel (%p218) target = $region28
      $region27: #{tpu_custom_call.1} parent=5 // pred_region
        // Predicated region
        $region29: #{tpu_custom_call.1} parent=27 // pred_check
          %p221 = pneg %p46
        $region30: #{tpu_custom_call.1} parent=27 // pred_check_branch
          %223 = sbr.rel (%p221) target = $region32
        $region31: #{tpu_custom_call.1} parent=27 // pred_region
          %s224 = sand.u32 %s36, 1
          %s225 = sand.u32 %s36, 1
          %s226 = smul.addr %s225, 64
          %s227 = scalar_lea.vmem [#allocation2], %s226
          %s228 = smul.u32 16, %s19
          %s229 = smul.addr %s228, 3
          %s230 = sadd.s32 %s20, %s229
          %s231 = smul.addr %s230, 4
          %s232 = scalar_lea.vmem %s0, %s231
          // Predicated region
          $region33: #{tpu_custom_call.1} parent=31 // pred_check
            _
          $region34: #{tpu_custom_call.1} parent=31 // pred_check_branch
            %234 = sbr.rel (0) target = $region36
          $region35: #{tpu_custom_call.1} parent=31 // pred_region
            // Predicated region
            $region37: #{tpu_custom_call.1} parent=35 // pred_check
              _
            $region38: #{tpu_custom_call.1} parent=35 // pred_check_branch
              %236 = sbr.rel target = $region40
            $region39: #{tpu_custom_call.1} parent=35 // pred_region
              // Predicated region
              $region52: #{tpu_custom_call.1} parent=39 // pred_check
                _
              $region53: #{tpu_custom_call.1} parent=39 // pred_check_branch
                %282 = sbr.rel (0) target = $region55
              $region54: #{tpu_custom_call.1} parent=39 // pred_region
                loop: start=0, step=1, limit=1
                $region56: #{tpu_custom_call.1} parent=54 // loop_pre_header
                  _
                $region57: #{tpu_custom_call.1} parent=54 // loop_header
                  %s284 = sphi 0, %s288
                  %p285 = scmp.ge.s32.totalorder %s284, 1
                  %s289 = sphi %s232, %s232
                  %s290 = sphi %s227, %s227
                $region58: #{tpu_custom_call.1} parent=54 // loop_header_branch
                  %287 = sbr.rel (%p285) target = $region62
                $region59: #{tpu_custom_call.1} parent=54 // loop_body
                  _
                $region60: #{tpu_custom_call.1} parent=54 // loop_footer
                  %s288 = sadd.s32 1, %s284
                $region61: #{tpu_custom_call.1} parent=54 // loop_footer_branch
                  %283 = sbr.rel target = $region57
                $region62: #{tpu_custom_call.1} parent=54 // loop_exit
                  _
                %s292 = ssub.s32 16, 1
                loop: start=0, step=1, limit=1
                $region63: #{tpu_custom_call.1} parent=54 // loop_pre_header
                  _
                $region64: #{tpu_custom_call.1} parent=54 // loop_header
                  %s294 = sphi 0, %s298
                  %p295 = scmp.ge.s32.totalorder %s294, 1
                  %s299 = sphi %s232, %s232
                  %s300 = sphi %s227, %s227
                $region65: #{tpu_custom_call.1} parent=54 // loop_header_branch
                  %297 = sbr.rel (%p295) target = $region69
                $region66: #{tpu_custom_call.1} parent=54 // loop_body
                  %v301 = vld [vmem:[%s299] sm:%s292]
                  %302 = vst [vmem:[%s300] sm:%s292] %v301
                  %v303 = vld [vmem:[%s299 + $0xc] sm:%s292]
                  %304 = vst [vmem:[%s300 + $0x4] sm:%s292] %v303
                  %v305 = vld [vmem:[%s299 + $0x18] sm:%s292]
                  %306 = vst [vmem:[%s300 + $0x8] sm:%s292] %v305
                  %v307 = vld [vmem:[%s299 + $0x24] sm:%s292]
                  %308 = vst [vmem:[%s300 + $0xc] sm:%s292] %v307
                  %v309 = vld [vmem:[%s299 + $0x30] sm:%s292]
                  %310 = vst [vmem:[%s300 + $0x10] sm:%s292] %v309
                  %v311 = vld [vmem:[%s299 + $0x3c] sm:%s292]
                  %312 = vst [vmem:[%s300 + $0x14] sm:%s292] %v311
                  %v313 = vld [vmem:[%s299 + $0x48] sm:%s292]
                  %314 = vst [vmem:[%s300 + $0x18] sm:%s292] %v313
                  %v315 = vld [vmem:[%s299 + $0x54] sm:%s292]
                  %316 = vst [vmem:[%s300 + $0x1c] sm:%s292] %v315
                  %v317 = vld [vmem:[%s299 + $0x60] sm:%s292]
                  %318 = vst [vmem:[%s300 + $0x20] sm:%s292] %v317
                  %v319 = vld [vmem:[%s299 + $0x6c] sm:%s292]
                  %320 = vst [vmem:[%s300 + $0x24] sm:%s292] %v319
                  %v321 = vld [vmem:[%s299 + $0x78] sm:%s292]
                  %322 = vst [vmem:[%s300 + $0x28] sm:%s292] %v321
                  %v323 = vld [vmem:[%s299 + $0x84] sm:%s292]
                  %324 = vst [vmem:[%s300 + $0x2c] sm:%s292] %v323
                  %v325 = vld [vmem:[%s299 + $0x90] sm:%s292]
                  %326 = vst [vmem:[%s300 + $0x30] sm:%s292] %v325
                  %v327 = vld [vmem:[%s299 + $0x9c] sm:%s292]
                  %328 = vst [vmem:[%s300 + $0x34] sm:%s292] %v327
                  %v329 = vld [vmem:[%s299 + $0xa8] sm:%s292]
                  %330 = vst [vmem:[%s300 + $0x38] sm:%s292] %v329
                  %v331 = vld [vmem:[%s299 + $0xb4] sm:%s292]
                  %332 = vst [vmem:[%s300 + $0x3c] sm:%s292] %v331
                $region67: #{tpu_custom_call.1} parent=54 // loop_footer
                  %s298 = sadd.s32 1, %s294
                $region68: #{tpu_custom_call.1} parent=54 // loop_footer_branch
                  %293 = sbr.rel target = $region64
                $region69: #{tpu_custom_call.1} parent=54 // loop_exit
                  _
              $region55: #{tpu_custom_call.1} parent=39 // pred_fallthru
                _
            $region40: #{tpu_custom_call.1} parent=35 // pred_fallthru
              _
            // Predicated region
            $region41: #{tpu_custom_call.1} parent=35 // pred_check
              _
            $region42: #{tpu_custom_call.1} parent=35 // pred_check_branch
              %238 = sbr.rel (0) target = $region44
            $region43: #{tpu_custom_call.1} parent=35 // pred_region
              %s240 = ssub.s32 16, 1
              loop: start=0, step=1, limit=1
              $region45: #{tpu_custom_call.1} parent=43 // loop_pre_header
                _
              $region46: #{tpu_custom_call.1} parent=43 // loop_header
                %s242 = sphi 0, %s246
                %p243 = scmp.ge.s32.totalorder %s242, 1
                %s247 = sphi %s232, %s232
                %s248 = sphi %s227, %s227
              $region47: #{tpu_custom_call.1} parent=43 // loop_header_branch
                %245 = sbr.rel (%p243) target = $region51
              $region48: #{tpu_custom_call.1} parent=43 // loop_body
                %v249 = vld [vmem:[%s247] sm:%s240]
                %250 = vst [vmem:[%s248] sm:%s240] %v249
                %v251 = vld [vmem:[%s247 + $0xc] sm:%s240]
                %252 = vst [vmem:[%s248 + $0x4] sm:%s240] %v251
                %v253 = vld [vmem:[%s247 + $0x18] sm:%s240]
                %254 = vst [vmem:[%s248 + $0x8] sm:%s240] %v253
                %v255 = vld [vmem:[%s247 + $0x24] sm:%s240]
                %256 = vst [vmem:[%s248 + $0xc] sm:%s240] %v255
                %v257 = vld [vmem:[%s247 + $0x30] sm:%s240]
                %258 = vst [vmem:[%s248 + $0x10] sm:%s240] %v257
                %v259 = vld [vmem:[%s247 + $0x3c] sm:%s240]
                %260 = vst [vmem:[%s248 + $0x14] sm:%s240] %v259
                %v261 = vld [vmem:[%s247 + $0x48] sm:%s240]
                %262 = vst [vmem:[%s248 + $0x18] sm:%s240] %v261
                %v263 = vld [vmem:[%s247 + $0x54] sm:%s240]
                %264 = vst [vmem:[%s248 + $0x1c] sm:%s240] %v263
                %v265 = vld [vmem:[%s247 + $0x60] sm:%s240]
                %266 = vst [vmem:[%s248 + $0x20] sm:%s240] %v265
                %v267 = vld [vmem:[%s247 + $0x6c] sm:%s240]
                %268 = vst [vmem:[%s248 + $0x24] sm:%s240] %v267
                %v269 = vld [vmem:[%s247 + $0x78] sm:%s240]
                %270 = vst [vmem:[%s248 + $0x28] sm:%s240] %v269
                %v271 = vld [vmem:[%s247 + $0x84] sm:%s240]
                %272 = vst [vmem:[%s248 + $0x2c] sm:%s240] %v271
                %v273 = vld [vmem:[%s247 + $0x90] sm:%s240]
                %274 = vst [vmem:[%s248 + $0x30] sm:%s240] %v273
                %v275 = vld [vmem:[%s247 + $0x9c] sm:%s240]
                %276 = vst [vmem:[%s248 + $0x34] sm:%s240] %v275
                %v277 = vld [vmem:[%s247 + $0xa8] sm:%s240]
                %278 = vst [vmem:[%s248 + $0x38] sm:%s240] %v277
                %v279 = vld [vmem:[%s247 + $0xb4] sm:%s240]
                %280 = vst [vmem:[%s248 + $0x3c] sm:%s240] %v279
              $region49: #{tpu_custom_call.1} parent=43 // loop_footer
                %s246 = sadd.s32 1, %s242
              $region50: #{tpu_custom_call.1} parent=43 // loop_footer_branch
                %241 = sbr.rel target = $region46
              $region51: #{tpu_custom_call.1} parent=43 // loop_exit
                _
            $region44: #{tpu_custom_call.1} parent=35 // pred_fallthru
              _
          $region36: #{tpu_custom_call.1} parent=31 // pred_fallthru
            _
          %333 = vnop
        $region32: #{tpu_custom_call.1} parent=27 // pred_fallthru
          _
        // Predicated region
        $region70: #{tpu_custom_call.1} parent=27 // pred_check
          %p334 = pneg %p72
        $region71: #{tpu_custom_call.1} parent=27 // pred_check_branch
          %336 = sbr.rel (%p334) target = $region73
        $region72: #{tpu_custom_call.1} parent=27 // pred_region
          %s337 = smul.u32 16, %s20
          %p338 = scmp.lt.s32.totalorder %s337, 47
          %s339 = scalar_select %p338, %s337, 47
          %s340 = smul.addr %s339, 8
          %s341 = scalar_lea.vmem %s1, %s340
          %s342 = smul.u32 16, %s20
        $region73: #{tpu_custom_call.1} parent=27 // pred_fallthru
          _
        // Predicated region
        $region74: #{tpu_custom_call.1} parent=27 // pred_check
          %p343 = pneg %p98
        $region75: #{tpu_custom_call.1} parent=27 // pred_check_branch
          %345 = sbr.rel (%p343) target = $region77
        $region76: #{tpu_custom_call.1} parent=27 // pred_region
          %s346 = smul.u32 16, %s19
          %p347 = scmp.lt.s32.totalorder %s346, 47
          %s348 = scalar_select %p347, %s346, 47
          %s349 = smul.addr %s348, 8
          %s350 = scalar_lea.vmem %s2, %s349
          %s351 = smul.u32 16, %s19
        $region77: #{tpu_custom_call.1} parent=27 // pred_fallthru
          _
      $region28: #{tpu_custom_call.1} parent=5 // pred_fallthru
        _
      %p352 = scmp.le.s32.totalorder 1, %s12
      %p353 = scmp.lt.s32.totalorder %s12, 10
      %p354 = pnand %p352, %p353
      %p355 = pneg %p354
      // Predicated region
      $region78: #{tpu_custom_call.1} parent=5 // pred_check
        _
      $region79: #{tpu_custom_call.1} parent=5 // pred_check_branch
        %357 = sbr.rel (%p354) target = $region81
      $region80: #{tpu_custom_call.1} parent=5 // pred_region
        %s358 = ssub.s32 %s12, 1
        %s359 = sand.u32 %s39, 1
        %s360 = sand.u32 %s39, 1
        %s361 = smul.addr %s360, 64
        %s362 = scalar_lea.vmem [#allocation2], %s361
        // Predicated region
        $region82: #{tpu_custom_call.1} parent=80 // pred_check
          %p363 = pneg %p52
        $region83: #{tpu_custom_call.1} parent=80 // pred_check_branch
          %365 = sbr.rel (%p363) target = $region85
        $region84: #{tpu_custom_call.1} parent=80 // pred_region
          _
        $region85: #{tpu_custom_call.1} parent=80 // pred_fallthru
          _
        %s366 = sand.u32 %s39, 1
        %s367 = sand.u32 %s39, 1
        %s368 = smul.addr %s367, 64
        %s369 = scalar_lea.vmem [#allocation2], %s368
        %p370 = pneg %p52
        %p371 = pneg %p49
        %s372 = smul.u32 16, %s22
        %p373 = scmp.lt.s32.totalorder %s372, 47
        %s374 = scalar_select %p373, %s372, 47
        %s375 = smul.addr %s374, 8
        %s376 = scalar_lea.vmem %s1, %s375
        %p377 = pneg %p78
        %p378 = pneg %p75
        %s379 = smul.u32 16, %s21
        %p380 = scmp.lt.s32.totalorder %s379, 47
        %s381 = scalar_select %p380, %s379, 47
        %s382 = smul.addr %s381, 8
        %s383 = scalar_lea.vmem %s2, %s382
        %p384 = pneg %p104
        %p385 = pneg %p101
        %p386 = pneg %p125
        %p387 = pneg %p122
        %p388 = pneg %p146
        %p389 = pneg %p143
        %p390 = pneg %p167
        %p391 = pneg %p164
        %p392 = pneg %p193
        %p393 = pneg %p190
        %s394 = smul.u32 16, %s21
        %p395 = scmp.lt.s32.totalorder %s394, 47
        %s396 = scalar_select %p395, %s394, 47
        %s397 = smul.addr %s396, 8
        %s398 = scalar_lea.vmem %s6, %s397
        %s399 = smul.u32 16, %s21
        %s400 = smul.u32 16, %s22
        %p401 = scmp.lt.s32.totalorder %s400, 47
        %s402 = scalar_select %p401, %s400, 47
        %s403 = smul.addr %s402, 8
        %s404 = scalar_lea.vmem %s1, %s403
        %s405 = smul.u32 16, %s22
        %s406 = smul.u32 16, %s21
        %p407 = scmp.lt.s32.totalorder %s406, 47
        %s408 = scalar_select %p407, %s406, 47
        %s409 = smul.addr %s408, 8
        %s410 = scalar_lea.vmem %s2, %s409
        %s411 = smul.u32 16, %s21
        %s412 = smul.u32 16, %s21
        %p413 = scmp.lt.s32.totalorder %s412, 47
        %s414 = scalar_select %p413, %s412, 47
        %s415 = smul.addr %s414, 8
        %s416 = scalar_lea.vmem %s6, %s415
        %s417 = smul.u32 16, %s21
        %p419 = scmp.eq.s32.totalorder %s22, 0
        // Predicated region
        $region86: #{tpu_custom_call.1} parent=80 // pred_check
          %p420 = pneg %p419
        $region87: #{tpu_custom_call.1} parent=80 // pred_check_branch
          %422 = sbr.rel (%p420) target = $region89
        $region88: #{tpu_custom_call.1} parent=80 // pred_region
          %v423 = vld [vmem:[%s410] sm:$0xff]
          %v424 = vld [vmem:[%s410 + $0x8] sm:$0xff]
          %v425 = vld [vmem:[%s410 + $0x10] sm:$0xff]
          %v426 = vld [vmem:[%s410 + $0x18] sm:$0xff]
          %v427 = vld [vmem:[%s410 + $0x20] sm:$0xff]
          %v428 = vld [vmem:[%s410 + $0x28] sm:$0xff]
          %v429 = vld [vmem:[%s410 + $0x30] sm:$0xff]
          %v430 = vld [vmem:[%s410 + $0x38] sm:$0xff]
          %v431 = vld [vmem:[%s410 + $0x40] sm:$0xff]
          %v432 = vld [vmem:[%s410 + $0x48] sm:$0xff]
          %v433 = vld [vmem:[%s410 + $0x50] sm:$0xff]
          %v434 = vld [vmem:[%s410 + $0x58] sm:$0xff]
          %v435 = vld [vmem:[%s410 + $0x60] sm:$0xff]
          %v436 = vld [vmem:[%s410 + $0x68] sm:$0xff]
          %v437 = vld [vmem:[%s410 + $0x70] sm:$0xff]
          %v438 = vld [vmem:[%s410 + $0x78] sm:$0xff]
          %v439 = vld [vmem:[%s4] sm:$0xff]
          %v440 = vld [vmem:[%s4 + $0x8] sm:$0xff]
          %v441 = vld [vmem:[%s4 + $0x10] sm:$0xff]
          %v442 = vld [vmem:[%s4 + $0x18] sm:$0xff]
          %v443 = vld [vmem:[%s5] sm:$0x1]
          %v445 = vlaneseq
          %v446 = vshrl.u32 %v445, 7
          %v447 = vsub.s32 0, %v446
          %v448 = vrot.slane %v443, %v447
          %vm450 = vcmask 261120
          %v452 = vsel %vm450, %v423, 0
          %v455 = vsel %vm450, %v424, 0
          %v458 = vsel %vm450, %v425, 0
          %v461 = vsel %vm450, %v426, 0
          %v464 = vsel %vm450, %v427, 0
          %v467 = vsel %vm450, %v428, 0
          %v470 = vsel %vm450, %v429, 0
          %v473 = vsel %vm450, %v430, 0
          %v476 = vsel %vm450, %v431, 0
          %v479 = vsel %vm450, %v432, 0
          %v482 = vsel %vm450, %v433, 0
          %v485 = vsel %vm450, %v434, 0
          %v488 = vsel %vm450, %v435, 0
          %v491 = vsel %vm450, %v436, 0
          %v494 = vsel %vm450, %v437, 0
          %v497 = vsel %vm450, %v438, 0
          %499 = vmatprep.subr.mxu0 0.0
          %500 = vmatpush1.msra.mxu0 0.0
          %501 = vmatprep.subr.mxu0 0.0
          %502 = vmatpush1.msra.mxu0 0.0
          %503 = vmatprep.subr.mxu0 0.0
          %504 = vmatpush1.msra.mxu0 0.0
          %505 = vmatprep.subr.mxu0 0.0
          %506 = vmatpush1.msra.mxu0 0.0
          %507 = vmatprep.subr.mxu0 0.0
          %508 = vmatpush1.msra.mxu0 0.0
          %509 = vmatprep.subr.mxu0 0.0
          %510 = vmatpush1.msra.mxu0 0.0
          %511 = vmatprep.subr.mxu0 0.0
          %512 = vmatpush1.msra.mxu0 0.0
          %513 = vmatprep.subr.mxu0 0.0
          %514 = vmatpush1.msra.mxu0 0.0
          %515 = vmatprep.subr.mxu0 0.0
          %516 = vmatpush1.msra.mxu0 0.0
          %517 = vmatprep.subr.mxu0 0.0
          %518 = vmatpush1.msra.mxu0 0.0
          %519 = vmatprep.subr.mxu0 0.0
          %520 = vmatpush1.msra.mxu0 0.0
          %521 = vmatprep.subr.mxu0 0.0
          %522 = vmatpush1.msra.mxu0 0.0
          %523 = vmatprep.subr.mxu0 0.0
          %524 = vmatpush1.msra.mxu0 %v442
          %525 = vmatprep.subr.mxu0 0.0
          %526 = vmatpush1.msra.mxu0 %v441
          %527 = vmatprep.subr.mxu0 0.0
          %528 = vmatpush1.msra.mxu0 %v440
          %529 = vmatprep.subr.mxu0 0.0
          %530 = vmatpush1.msra.mxu0 %v439
          %531 = vmatprep.subr.mxu0 0.0
          %532 = vmatpush2.msra.mxu0 0.0
          %533 = vmatprep.subr.mxu0 0.0
          %534 = vmatpush2.msra.mxu0 0.0
          %535 = vmatprep.subr.mxu0 0.0
          %536 = vmatpush2.msra.mxu0 0.0
          %537 = vmatprep.subr.mxu0 0.0
          %538 = vmatpush2.msra.mxu0 0.0
          %539 = vmatprep.subr.mxu0 0.0
          %540 = vmatpush2.msra.mxu0 0.0
          %541 = vmatprep.subr.mxu0 0.0
          %542 = vmatpush2.msra.mxu0 0.0
          %543 = vmatprep.subr.mxu0 0.0
          %544 = vmatpush2.msra.mxu0 0.0
          %545 = vmatprep.subr.mxu0 0.0
          %546 = vmatpush2.msra.mxu0 0.0
          %547 = vmatprep.subr.mxu0 0.0
          %548 = vmatpush2.msra.mxu0 0.0
          %549 = vmatprep.subr.mxu0 0.0
          %550 = vmatpush2.msra.mxu0 0.0
          %551 = vmatprep.subr.mxu0 0.0
          %552 = vmatpush2.msra.mxu0 0.0
          %553 = vmatprep.subr.mxu0 0.0
          %554 = vmatpush2.msra.mxu0 0.0
          %555 = vmatprep.subr.mxu0 0.0
          %556 = vmatpush2.msra.mxu0 0.0
          %557 = vmatprep.subr.mxu0 0.0
          %558 = vmatpush2.msra.mxu0 0.0
          %559 = vmatprep.subr.mxu0 0.0
          %560 = vmatpush2.msra.mxu0 0.0
          %561 = vmatprep.subr.mxu0 0.0
          %562 = vmatpush2.msra.mxu0 0.0
          %563 = vmatprep.mubr.f32.mxu0 0.0
          %564 = vmatmul.mubr.f32.gmra.mxu0 %v452
          %v565 = vpop.f32.mrf.mxu0
          %v566 = vadd.f32 %v448, %v565
          %v567 = vpop.f32.mrf.mxu0
          %568 = vmatprep.mubr.f32.mxu0 0.0
          %569 = vmatmul.mubr.f32.gmra.mxu0 %v455
          %v570 = vpop.f32.mrf.mxu0
          %v571 = vadd.f32 %v448, %v570
          %v572 = vpop.f32.mrf.mxu0
          %573 = vmatprep.mubr.f32.mxu0 0.0
          %574 = vmatmul.mubr.f32.gmra.mxu0 %v458
          %v575 = vpop.f32.mrf.mxu0
          %v576 = vadd.f32 %v448, %v575
          %v577 = vpop.f32.mrf.mxu0
          %578 = vmatprep.mubr.f32.mxu0 0.0
          %579 = vmatmul.mubr.f32.gmra.mxu0 %v461
          %v580 = vpop.f32.mrf.mxu0
          %v581 = vadd.f32 %v448, %v580
          %v582 = vpop.f32.mrf.mxu0
          %583 = vmatprep.mubr.f32.mxu0 0.0
          %584 = vmatmul.mubr.f32.gmra.mxu0 %v464
          %v585 = vpop.f32.mrf.mxu0
          %v586 = vadd.f32 %v448, %v585
          %v587 = vpop.f32.mrf.mxu0
          %588 = vmatprep.mubr.f32.mxu0 0.0
          %589 = vmatmul.mubr.f32.gmra.mxu0 %v467
          %v590 = vpop.f32.mrf.mxu0
          %v591 = vadd.f32 %v448, %v590
          %v592 = vpop.f32.mrf.mxu0
          %593 = vmatprep.mubr.f32.mxu0 0.0
          %594 = vmatmul.mubr.f32.gmra.mxu0 %v470
          %v595 = vpop.f32.mrf.mxu0
          %v596 = vadd.f32 %v448, %v595
          %v597 = vpop.f32.mrf.mxu0
          %598 = vmatprep.mubr.f32.mxu0 0.0
          %599 = vmatmul.mubr.f32.gmra.mxu0 %v473
          %v600 = vpop.f32.mrf.mxu0
          %v601 = vadd.f32 %v448, %v600
          %v602 = vpop.f32.mrf.mxu0
          %603 = vmatprep.mubr.f32.mxu0 0.0
          %604 = vmatmul.mubr.f32.gmra.mxu0 %v476
          %v605 = vpop.f32.mrf.mxu0
          %v606 = vadd.f32 %v448, %v605
          %v607 = vpop.f32.mrf.mxu0
          %608 = vmatprep.mubr.f32.mxu0 0.0
          %609 = vmatmul.mubr.f32.gmra.mxu0 %v479
          %v610 = vpop.f32.mrf.mxu0
          %v611 = vadd.f32 %v448, %v610
          %v612 = vpop.f32.mrf.mxu0
          %613 = vmatprep.mubr.f32.mxu0 0.0
          %614 = vmatmul.mubr.f32.gmra.mxu0 %v482
          %v615 = vpop.f32.mrf.mxu0
          %v616 = vadd.f32 %v448, %v615
          %v617 = vpop.f32.mrf.mxu0
          %618 = vmatprep.mubr.f32.mxu0 0.0
          %619 = vmatmul.mubr.f32.gmra.mxu0 %v485
          %v620 = vpop.f32.mrf.mxu0
          %v621 = vadd.f32 %v448, %v620
          %v622 = vpop.f32.mrf.mxu0
          %623 = vmatprep.mubr.f32.mxu0 0.0
          %624 = vmatmul.mubr.f32.gmra.mxu0 %v488
          %v625 = vpop.f32.mrf.mxu0
          %v626 = vadd.f32 %v448, %v625
          %v627 = vpop.f32.mrf.mxu0
          %628 = vmatprep.mubr.f32.mxu0 0.0
          %629 = vmatmul.mubr.f32.gmra.mxu0 %v491
          %v630 = vpop.f32.mrf.mxu0
          %v631 = vadd.f32 %v448, %v630
          %v632 = vpop.f32.mrf.mxu0
          %633 = vmatprep.mubr.f32.mxu0 0.0
          %634 = vmatmul.mubr.f32.gmra.mxu0 %v494
          %v635 = vpop.f32.mrf.mxu0
          %v636 = vadd.f32 %v448, %v635
          %v637 = vpop.f32.mrf.mxu0
          %638 = vmatprep.mubr.f32.mxu0 0.0
          %639 = vmatmul.mubr.f32.gmra.mxu0 %v497
          %v640 = vpop.f32.mrf.mxu0
          %v641 = vadd.f32 %v448, %v640
          %v642 = vpop.f32.mrf.mxu0
          %643 = vdwg.mxu0
          %vm644 = vcmask 523264
          %645 = vst.msk [vmem:[%s416] sm:$0xff] %vm644, %v566
          %646 = vst.msk [vmem:[%s416 + $0x8] sm:$0xff] %vm644, %v571
          %647 = vst.msk [vmem:[%s416 + $0x10] sm:$0xff] %vm644, %v576
          %648 = vst.msk [vmem:[%s416 + $0x18] sm:$0xff] %vm644, %v581
          %649 = vst.msk [vmem:[%s416 + $0x20] sm:$0xff] %vm644, %v586
          %650 = vst.msk [vmem:[%s416 + $0x28] sm:$0xff] %vm644, %v591
          %651 = vst.msk [vmem:[%s416 + $0x30] sm:$0xff] %vm644, %v596
          %652 = vst.msk [vmem:[%s416 + $0x38] sm:$0xff] %vm644, %v601
          %653 = vst.msk [vmem:[%s416 + $0x40] sm:$0xff] %vm644, %v606
          %654 = vst.msk [vmem:[%s416 + $0x48] sm:$0xff] %vm644, %v611
          %655 = vst.msk [vmem:[%s416 + $0x50] sm:$0xff] %vm644, %v616
          %656 = vst.msk [vmem:[%s416 + $0x58] sm:$0xff] %vm644, %v621
          %657 = vst.msk [vmem:[%s416 + $0x60] sm:$0xff] %vm644, %v626
          %658 = vst.msk [vmem:[%s416 + $0x68] sm:$0xff] %vm644, %v631
          %659 = vst.msk [vmem:[%s416 + $0x70] sm:$0xff] %vm644, %v636
          %660 = vst.msk [vmem:[%s416 + $0x78] sm:$0xff] %vm644, %v641
        $region89: #{tpu_custom_call.1} parent=80 // pred_fallthru
          _
        %v661 = vld [vmem:[%s404] sm:$0xff]
        %v662 = vld [vmem:[%s404 + $0x8] sm:$0xff]
        %v663 = vld [vmem:[%s404 + $0x10] sm:$0xff]
        %v664 = vld [vmem:[%s404 + $0x18] sm:$0xff]
        %v665 = vld [vmem:[%s404 + $0x20] sm:$0xff]
        %v666 = vld [vmem:[%s404 + $0x28] sm:$0xff]
        %v667 = vld [vmem:[%s404 + $0x30] sm:$0xff]
        %v668 = vld [vmem:[%s404 + $0x38] sm:$0xff]
        %v669 = vld [vmem:[%s404 + $0x40] sm:$0xff]
        %v670 = vld [vmem:[%s404 + $0x48] sm:$0xff]
        %v671 = vld [vmem:[%s404 + $0x50] sm:$0xff]
        %v672 = vld [vmem:[%s404 + $0x58] sm:$0xff]
        %v673 = vld [vmem:[%s404 + $0x60] sm:$0xff]
        %v674 = vld [vmem:[%s404 + $0x68] sm:$0xff]
        %v675 = vld [vmem:[%s404 + $0x70] sm:$0xff]
        %v676 = vld [vmem:[%s404 + $0x78] sm:$0xff]
        %v677 = vld [vmem:[%s3] sm:$0xff]
        %v678 = vld [vmem:[%s3 + $0x8] sm:$0xff]
        %v679 = vld [vmem:[%s3 + $0x10] sm:$0xff]
        %v680 = vld [vmem:[%s3 + $0x18] sm:$0xff]
        %vm681 = vcmask 261120
        %v683 = vsel %vm681, %v661, 0
        %v686 = vsel %vm681, %v662, 0
        %v689 = vsel %vm681, %v663, 0
        %v692 = vsel %vm681, %v664, 0
        %v695 = vsel %vm681, %v665, 0
        %v698 = vsel %vm681, %v666, 0
        %v701 = vsel %vm681, %v667, 0
        %v704 = vsel %vm681, %v668, 0
        %v707 = vsel %vm681, %v669, 0
        %v710 = vsel %vm681, %v670, 0
        %v713 = vsel %vm681, %v671, 0
        %v716 = vsel %vm681, %v672, 0
        %v719 = vsel %vm681, %v673, 0
        %v722 = vsel %vm681, %v674, 0
        %v725 = vsel %vm681, %v675, 0
        %v728 = vsel %vm681, %v676, 0
        %730 = vmatprep.subr.mxu0 0.0
        %731 = vmatpush1.msra.mxu0 0.0
        %732 = vmatprep.subr.mxu0 0.0
        %733 = vmatpush1.msra.mxu0 0.0
        %734 = vmatprep.subr.mxu0 0.0
        %735 = vmatpush1.msra.mxu0 0.0
        %736 = vmatprep.subr.mxu0 0.0
        %737 = vmatpush1.msra.mxu0 0.0
        %738 = vmatprep.subr.mxu0 0.0
        %739 = vmatpush1.msra.mxu0 0.0
        %740 = vmatprep.subr.mxu0 0.0
        %741 = vmatpush1.msra.mxu0 0.0
        %742 = vmatprep.subr.mxu0 0.0
        %743 = vmatpush1.msra.mxu0 0.0
        %744 = vmatprep.subr.mxu0 0.0
        %745 = vmatpush1.msra.mxu0 0.0
        %746 = vmatprep.subr.mxu0 0.0
        %747 = vmatpush1.msra.mxu0 0.0
        %748 = vmatprep.subr.mxu0 0.0
        %749 = vmatpush1.msra.mxu0 0.0
        %750 = vmatprep.subr.mxu0 0.0
        %751 = vmatpush1.msra.mxu0 0.0
        %752 = vmatprep.subr.mxu0 0.0
        %753 = vmatpush1.msra.mxu0 0.0
        %754 = vmatprep.subr.mxu0 0.0
        %755 = vmatpush1.msra.mxu0 %v680
        %756 = vmatprep.subr.mxu0 0.0
        %757 = vmatpush1.msra.mxu0 %v679
        %758 = vmatprep.subr.mxu0 0.0
        %759 = vmatpush1.msra.mxu0 %v678
        %760 = vmatprep.subr.mxu0 0.0
        %761 = vmatpush1.msra.mxu0 %v677
        %762 = vmatprep.subr.mxu0 0.0
        %763 = vmatpush2.msra.mxu0 0.0
        %764 = vmatprep.subr.mxu0 0.0
        %765 = vmatpush2.msra.mxu0 0.0
        %766 = vmatprep.subr.mxu0 0.0
        %767 = vmatpush2.msra.mxu0 0.0
        %768 = vmatprep.subr.mxu0 0.0
        %769 = vmatpush2.msra.mxu0 0.0
        %770 = vmatprep.subr.mxu0 0.0
        %771 = vmatpush2.msra.mxu0 0.0
        %772 = vmatprep.subr.mxu0 0.0
        %773 = vmatpush2.msra.mxu0 0.0
        %774 = vmatprep.subr.mxu0 0.0
        %775 = vmatpush2.msra.mxu0 0.0
        %776 = vmatprep.subr.mxu0 0.0
        %777 = vmatpush2.msra.mxu0 0.0
        %778 = vmatprep.subr.mxu0 0.0
        %779 = vmatpush2.msra.mxu0 0.0
        %780 = vmatprep.subr.mxu0 0.0
        %781 = vmatpush2.msra.mxu0 0.0
        %782 = vmatprep.subr.mxu0 0.0
        %783 = vmatpush2.msra.mxu0 0.0
        %784 = vmatprep.subr.mxu0 0.0
        %785 = vmatpush2.msra.mxu0 0.0
        %786 = vmatprep.subr.mxu0 0.0
        %787 = vmatpush2.msra.mxu0 0.0
        %788 = vmatprep.subr.mxu0 0.0
        %789 = vmatpush2.msra.mxu0 0.0
        %790 = vmatprep.subr.mxu0 0.0
        %791 = vmatpush2.msra.mxu0 0.0
        %792 = vmatprep.subr.mxu0 0.0
        %793 = vmatpush2.msra.mxu0 0.0
        %794 = vmatprep.mubr.f32.mxu0 0.0
        %795 = vmatmul.mubr.f32.gmra.mxu0 %v683
        %v796 = vpop.f32.mrf.mxu0
        %v797 = vadd.f32 0.0, %v796
        %v798 = vpop.f32.mrf.mxu0
        %799 = vmatprep.mubr.f32.mxu0 0.0
        %800 = vmatmul.mubr.f32.gmra.mxu0 %v686
        %v801 = vpop.f32.mrf.mxu0
        %v802 = vadd.f32 0.0, %v801
        %v803 = vpop.f32.mrf.mxu0
        %804 = vmatprep.mubr.f32.mxu0 0.0
        %805 = vmatmul.mubr.f32.gmra.mxu0 %v689
        %v806 = vpop.f32.mrf.mxu0
        %v807 = vadd.f32 0.0, %v806
        %v808 = vpop.f32.mrf.mxu0
        %809 = vmatprep.mubr.f32.mxu0 0.0
        %810 = vmatmul.mubr.f32.gmra.mxu0 %v692
        %v811 = vpop.f32.mrf.mxu0
        %v812 = vadd.f32 0.0, %v811
        %v813 = vpop.f32.mrf.mxu0
        %814 = vmatprep.mubr.f32.mxu0 0.0
        %815 = vmatmul.mubr.f32.gmra.mxu0 %v695
        %v816 = vpop.f32.mrf.mxu0
        %v817 = vadd.f32 0.0, %v816
        %v818 = vpop.f32.mrf.mxu0
        %819 = vmatprep.mubr.f32.mxu0 0.0
        %820 = vmatmul.mubr.f32.gmra.mxu0 %v698
        %v821 = vpop.f32.mrf.mxu0
        %v822 = vadd.f32 0.0, %v821
        %v823 = vpop.f32.mrf.mxu0
        %824 = vmatprep.mubr.f32.mxu0 0.0
        %825 = vmatmul.mubr.f32.gmra.mxu0 %v701
        %v826 = vpop.f32.mrf.mxu0
        %v827 = vadd.f32 0.0, %v826
        %v828 = vpop.f32.mrf.mxu0
        %829 = vmatprep.mubr.f32.mxu0 0.0
        %830 = vmatmul.mubr.f32.gmra.mxu0 %v704
        %v831 = vpop.f32.mrf.mxu0
        %v832 = vadd.f32 0.0, %v831
        %v833 = vpop.f32.mrf.mxu0
        %834 = vmatprep.mubr.f32.mxu0 0.0
        %835 = vmatmul.mubr.f32.gmra.mxu0 %v707
        %v836 = vpop.f32.mrf.mxu0
        %v837 = vadd.f32 0.0, %v836
        %v838 = vpop.f32.mrf.mxu0
        %839 = vmatprep.mubr.f32.mxu0 0.0
        %840 = vmatmul.mubr.f32.gmra.mxu0 %v710
        %v841 = vpop.f32.mrf.mxu0
        %v842 = vadd.f32 0.0, %v841
        %v843 = vpop.f32.mrf.mxu0
        %844 = vmatprep.mubr.f32.mxu0 0.0
        %845 = vmatmul.mubr.f32.gmra.mxu0 %v713
        %v846 = vpop.f32.mrf.mxu0
        %v847 = vadd.f32 0.0, %v846
        %v848 = vpop.f32.mrf.mxu0
        %849 = vmatprep.mubr.f32.mxu0 0.0
        %850 = vmatmul.mubr.f32.gmra.mxu0 %v716
        %v851 = vpop.f32.mrf.mxu0
        %v852 = vadd.f32 0.0, %v851
        %v853 = vpop.f32.mrf.mxu0
        %854 = vmatprep.mubr.f32.mxu0 0.0
        %855 = vmatmul.mubr.f32.gmra.mxu0 %v719
        %v856 = vpop.f32.mrf.mxu0
        %v857 = vadd.f32 0.0, %v856
        %v858 = vpop.f32.mrf.mxu0
        %859 = vmatprep.mubr.f32.mxu0 0.0
        %860 = vmatmul.mubr.f32.gmra.mxu0 %v722
        %v861 = vpop.f32.mrf.mxu0
        %v862 = vadd.f32 0.0, %v861
        %v863 = vpop.f32.mrf.mxu0
        %864 = vmatprep.mubr.f32.mxu0 0.0
        %865 = vmatmul.mubr.f32.gmra.mxu0 %v725
        %v866 = vpop.f32.mrf.mxu0
        %v867 = vadd.f32 0.0, %v866
        %v868 = vpop.f32.mrf.mxu0
        %869 = vmatprep.mubr.f32.mxu0 0.0
        %870 = vmatmul.mubr.f32.gmra.mxu0 %v728
        %v871 = vpop.f32.mrf.mxu0
        %v872 = vadd.f32 0.0, %v871
        %v873 = vpop.f32.mrf.mxu0
        %874 = vdwg.mxu0
        %v875 = vld [vmem:[%s416] sm:$0xff]
        %v876 = vld [vmem:[%s416 + $0x8] sm:$0xff]
        %v877 = vld [vmem:[%s416 + $0x10] sm:$0xff]
        %v878 = vld [vmem:[%s416 + $0x18] sm:$0xff]
        %v879 = vld [vmem:[%s416 + $0x20] sm:$0xff]
        %v880 = vld [vmem:[%s416 + $0x28] sm:$0xff]
        %v881 = vld [vmem:[%s416 + $0x30] sm:$0xff]
        %v882 = vld [vmem:[%s416 + $0x38] sm:$0xff]
        %v883 = vld [vmem:[%s416 + $0x40] sm:$0xff]
        %v884 = vld [vmem:[%s416 + $0x48] sm:$0xff]
        %v885 = vld [vmem:[%s416 + $0x50] sm:$0xff]
        %v886 = vld [vmem:[%s416 + $0x58] sm:$0xff]
        %v887 = vld [vmem:[%s416 + $0x60] sm:$0xff]
        %v888 = vld [vmem:[%s416 + $0x68] sm:$0xff]
        %v889 = vld [vmem:[%s416 + $0x70] sm:$0xff]
        %v890 = vld [vmem:[%s416 + $0x78] sm:$0xff]
        %v891 = vld [vmem:[%s362] sm:$0xf]
        %v892 = vld [vmem:[%s362 + $0x4] sm:$0xf]
        %v893 = vld [vmem:[%s362 + $0x8] sm:$0xf]
        %v894 = vld [vmem:[%s362 + $0xc] sm:$0xf]
        %v895 = vld [vmem:[%s362 + $0x10] sm:$0xf]
        %v896 = vld [vmem:[%s362 + $0x14] sm:$0xf]
        %v897 = vld [vmem:[%s362 + $0x18] sm:$0xf]
        %v898 = vld [vmem:[%s362 + $0x1c] sm:$0xf]
        %v899 = vld [vmem:[%s362 + $0x20] sm:$0xf]
        %v900 = vld [vmem:[%s362 + $0x24] sm:$0xf]
        %v901 = vld [vmem:[%s362 + $0x28] sm:$0xf]
        %v902 = vld [vmem:[%s362 + $0x2c] sm:$0xf]
        %v903 = vld [vmem:[%s362 + $0x30] sm:$0xf]
        %v904 = vld [vmem:[%s362 + $0x34] sm:$0xf]
        %v905 = vld [vmem:[%s362 + $0x38] sm:$0xf]
        %v906 = vld [vmem:[%s362 + $0x3c] sm:$0xf]
        %v907 = vpack.c.bf16 %v802, %v797
        %v908 = vpack.c.bf16 %v812, %v807
        %v909 = vpack.c.bf16 %v822, %v817
        %v910 = vpack.c.bf16 %v832, %v827
        %v911 = vpack.c.bf16 %v842, %v837
        %v912 = vpack.c.bf16 %v852, %v847
        %v913 = vpack.c.bf16 %v862, %v857
        %v914 = vpack.c.bf16 %v872, %v867
        %v931 = vunpack.c.l.b16 %v891
        %v932 = vunpack.c.l.b16 %v892
        %v933 = vunpack.c.l.b16 %v893
        %v934 = vunpack.c.l.b16 %v894
        %v935 = vunpack.c.l.b16 %v895
        %v936 = vunpack.c.l.b16 %v896
        %v937 = vunpack.c.l.b16 %v897
        %v938 = vunpack.c.l.b16 %v898
        %v939 = vunpack.c.l.b16 %v899
        %v940 = vunpack.c.l.b16 %v900
        %v941 = vunpack.c.l.b16 %v901
        %v942 = vunpack.c.l.b16 %v902
        %v943 = vunpack.c.l.b16 %v903
        %v944 = vunpack.c.l.b16 %v904
        %v945 = vunpack.c.l.b16 %v905
        %v946 = vunpack.c.l.b16 %v906
        %v947 = vpack.c.b16 %v932, %v931
        %v948 = vpack.c.b16 %v934, %v933
        %v949 = vpack.c.b16 %v936, %v935
        %v950 = vpack.c.b16 %v938, %v937
        %v951 = vpack.c.b16 %v940, %v939
        %v952 = vpack.c.b16 %v942, %v941
        %v953 = vpack.c.b16 %v944, %v943
        %v954 = vpack.c.b16 %v946, %v945
        %963 = vmatprep.subr.bf16.mxu0 0
        %964 = vmatpush1.bf16.msra.mxu0 %v914
        %965 = vmatprep.subr.bf16.mxu0 0
        %966 = vmatpush1.bf16.msra.mxu0 %v913
        %967 = vmatprep.subr.bf16.mxu0 0
        %968 = vmatpush1.bf16.msra.mxu0 %v912
        %969 = vmatprep.subr.bf16.mxu0 0
        %970 = vmatpush1.bf16.msra.mxu0 %v911
        %971 = vmatprep.subr.bf16.mxu0 0
        %972 = vmatpush1.bf16.msra.mxu0 %v910
        %973 = vmatprep.subr.bf16.mxu0 0
        %974 = vmatpush1.bf16.msra.mxu0 %v909
        %975 = vmatprep.subr.bf16.mxu0 0
        %976 = vmatpush1.bf16.msra.mxu0 %v908
        %977 = vmatprep.subr.bf16.mxu0 0
        %978 = vmatpush1.bf16.msra.mxu0 %v907
        %979 = vmatprep.subr.bf16.mxu0 0
        %980 = vmatpush2.bf16.msra.mxu0 0
        %981 = vmatprep.subr.bf16.mxu0 0
        %982 = vmatpush2.bf16.msra.mxu0 0
        %983 = vmatprep.subr.bf16.mxu0 0
        %984 = vmatpush2.bf16.msra.mxu0 0
        %985 = vmatprep.subr.bf16.mxu0 0
        %986 = vmatpush2.bf16.msra.mxu0 0
        %987 = vmatprep.subr.bf16.mxu0 0
        %988 = vmatpush2.bf16.msra.mxu0 0
        %989 = vmatprep.subr.bf16.mxu0 0
        %990 = vmatpush2.bf16.msra.mxu0 0
        %991 = vmatprep.subr.bf16.mxu0 0
        %992 = vmatpush2.bf16.msra.mxu0 0
        %993 = vmatprep.subr.bf16.mxu0 0
        %994 = vmatpush2.bf16.msra.mxu0 0
        %995 = vmatprep.mubr.bf16.mxu0 0
        %996 = vmatmul.mubr.bf16.gmra.mxu0 %v947
        %v997 = vpop.f32.mrf.mxu0
        %v998 = vadd.f32 0.0, %v997
        %v999 = vpop.f32.mrf.mxu0
        %v1000 = vpop.f32.mrf.mxu0
        %v1001 = vadd.f32 0.0, %v1000
        %v1002 = vpop.f32.mrf.mxu0
        %1003 = vmatprep.mubr.bf16.mxu0 0
        %1004 = vmatmul.mubr.bf16.gmra.mxu0 %v948
        %v1005 = vpop.f32.mrf.mxu0
        %v1006 = vadd.f32 0.0, %v1005
        %v1007 = vpop.f32.mrf.mxu0
        %v1008 = vpop.f32.mrf.mxu0
        %v1009 = vadd.f32 0.0, %v1008
        %v1010 = vpop.f32.mrf.mxu0
        %1011 = vmatprep.mubr.bf16.mxu0 0
        %1012 = vmatmul.mubr.bf16.gmra.mxu0 %v949
        %v1013 = vpop.f32.mrf.mxu0
        %v1014 = vadd.f32 0.0, %v1013
        %v1015 = vpop.f32.mrf.mxu0
        %v1016 = vpop.f32.mrf.mxu0
        %v1017 = vadd.f32 0.0, %v1016
        %v1018 = vpop.f32.mrf.mxu0
        %1019 = vmatprep.mubr.bf16.mxu0 0
        %1020 = vmatmul.mubr.bf16.gmra.mxu0 %v950
        %v1021 = vpop.f32.mrf.mxu0
        %v1022 = vadd.f32 0.0, %v1021
        %v1023 = vpop.f32.mrf.mxu0
        %v1024 = vpop.f32.mrf.mxu0
        %v1025 = vadd.f32 0.0, %v1024
        %v1026 = vpop.f32.mrf.mxu0
        %1027 = vmatprep.mubr.bf16.mxu0 0
        %1028 = vmatmul.mubr.bf16.gmra.mxu0 %v951
        %v1029 = vpop.f32.mrf.mxu0
        %v1030 = vadd.f32 0.0, %v1029
        %v1031 = vpop.f32.mrf.mxu0
        %v1032 = vpop.f32.mrf.mxu0
        %v1033 = vadd.f32 0.0, %v1032
        %v1034 = vpop.f32.mrf.mxu0
        %1035 = vmatprep.mubr.bf16.mxu0 0
        %1036 = vmatmul.mubr.bf16.gmra.mxu0 %v952
        %v1037 = vpop.f32.mrf.mxu0
        %v1038 = vadd.f32 0.0, %v1037
        %v1039 = vpop.f32.mrf.mxu0
        %v1040 = vpop.f32.mrf.mxu0
        %v1041 = vadd.f32 0.0, %v1040
        %v1042 = vpop.f32.mrf.mxu0
        %1043 = vmatprep.mubr.bf16.mxu0 0
        %1044 = vmatmul.mubr.bf16.gmra.mxu0 %v953
        %v1045 = vpop.f32.mrf.mxu0
        %v1046 = vadd.f32 0.0, %v1045
        %v1047 = vpop.f32.mrf.mxu0
        %v1048 = vpop.f32.mrf.mxu0
        %v1049 = vadd.f32 0.0, %v1048
        %v1050 = vpop.f32.mrf.mxu0
        %1051 = vmatprep.mubr.bf16.mxu0 0
        %1052 = vmatmul.mubr.bf16.gmra.mxu0 %v954
        %v1053 = vpop.f32.mrf.mxu0
        %v1054 = vadd.f32 0.0, %v1053
        %v1055 = vpop.f32.mrf.mxu0
        %v1056 = vpop.f32.mrf.mxu0
        %v1057 = vadd.f32 0.0, %v1056
        %v1058 = vpop.f32.mrf.mxu0
        %1059 = vdwg.mxu0
        %v1060 = vadd.f32 %v875, %v998
        %v1061 = vadd.f32 %v876, %v1001
        %v1062 = vadd.f32 %v877, %v1006
        %v1063 = vadd.f32 %v878, %v1009
        %v1064 = vadd.f32 %v879, %v1014
        %v1065 = vadd.f32 %v880, %v1017
        %v1066 = vadd.f32 %v881, %v1022
        %v1067 = vadd.f32 %v882, %v1025
        %v1068 = vadd.f32 %v883, %v1030
        %v1069 = vadd.f32 %v884, %v1033
        %v1070 = vadd.f32 %v885, %v1038
        %v1071 = vadd.f32 %v886, %v1041
        %v1072 = vadd.f32 %v887, %v1046
        %v1073 = vadd.f32 %v888, %v1049
        %v1074 = vadd.f32 %v889, %v1054
        %v1075 = vadd.f32 %v890, %v1057
        %vm1076 = vcmask 523264
        %1077 = vst.msk [vmem:[%s416] sm:$0xff] %vm1076, %v1060
        %1078 = vst.msk [vmem:[%s416 + $0x8] sm:$0xff] %vm1076, %v1061
        %1079 = vst.msk [vmem:[%s416 + $0x10] sm:$0xff] %vm1076, %v1062
        %1080 = vst.msk [vmem:[%s416 + $0x18] sm:$0xff] %vm1076, %v1063
        %1081 = vst.msk [vmem:[%s416 + $0x20] sm:$0xff] %vm1076, %v1064
        %1082 = vst.msk [vmem:[%s416 + $0x28] sm:$0xff] %vm1076, %v1065
        %1083 = vst.msk [vmem:[%s416 + $0x30] sm:$0xff] %vm1076, %v1066
        %1084 = vst.msk [vmem:[%s416 + $0x38] sm:$0xff] %vm1076, %v1067
        %1085 = vst.msk [vmem:[%s416 + $0x40] sm:$0xff] %vm1076, %v1068
        %1086 = vst.msk [vmem:[%s416 + $0x48] sm:$0xff] %vm1076, %v1069
        %1087 = vst.msk [vmem:[%s416 + $0x50] sm:$0xff] %vm1076, %v1070
        %1088 = vst.msk [vmem:[%s416 + $0x58] sm:$0xff] %vm1076, %v1071
        %1089 = vst.msk [vmem:[%s416 + $0x60] sm:$0xff] %vm1076, %v1072
        %1090 = vst.msk [vmem:[%s416 + $0x68] sm:$0xff] %vm1076, %v1073
        %1091 = vst.msk [vmem:[%s416 + $0x70] sm:$0xff] %vm1076, %v1074
        %1092 = vst.msk [vmem:[%s416 + $0x78] sm:$0xff] %vm1076, %v1075
        %p1093 = scmp.eq.s32.totalorder %s22, 2
        // Predicated region
        $region90: #{tpu_custom_call.1} parent=80 // pred_check
          %p1094 = pneg %p1093
        $region91: #{tpu_custom_call.1} parent=80 // pred_check_branch
          %1096 = sbr.rel (%p1094) target = $region93
        $region92: #{tpu_custom_call.1} parent=80 // pred_region
          %v1097 = vld [vmem:[%s416] sm:$0xff]
          %v1098 = vld [vmem:[%s416 + $0x8] sm:$0xff]
          %v1099 = vld [vmem:[%s416 + $0x10] sm:$0xff]
          %v1100 = vld [vmem:[%s416 + $0x18] sm:$0xff]
          %v1101 = vld [vmem:[%s416 + $0x20] sm:$0xff]
          %v1102 = vld [vmem:[%s416 + $0x28] sm:$0xff]
          %v1103 = vld [vmem:[%s416 + $0x30] sm:$0xff]
          %v1104 = vld [vmem:[%s416 + $0x38] sm:$0xff]
          %v1105 = vld [vmem:[%s416 + $0x40] sm:$0xff]
          %v1106 = vld [vmem:[%s416 + $0x48] sm:$0xff]
          %v1107 = vld [vmem:[%s416 + $0x50] sm:$0xff]
          %v1108 = vld [vmem:[%s416 + $0x58] sm:$0xff]
          %v1109 = vld [vmem:[%s416 + $0x60] sm:$0xff]
          %v1110 = vld [vmem:[%s416 + $0x68] sm:$0xff]
          %v1111 = vld [vmem:[%s416 + $0x70] sm:$0xff]
          %v1112 = vld [vmem:[%s416 + $0x78] sm:$0xff]
          %v1113 = vmax.f32 %v1097, 0.0
          %v1114 = vmax.f32 %v1098, 0.0
          %v1115 = vmax.f32 %v1099, 0.0
          %v1116 = vmax.f32 %v1100, 0.0
          %v1117 = vmax.f32 %v1101, 0.0
          %v1118 = vmax.f32 %v1102, 0.0
          %v1119 = vmax.f32 %v1103, 0.0
          %v1120 = vmax.f32 %v1104, 0.0
          %v1121 = vmax.f32 %v1105, 0.0
          %v1122 = vmax.f32 %v1106, 0.0
          %v1123 = vmax.f32 %v1107, 0.0
          %v1124 = vmax.f32 %v1108, 0.0
          %v1125 = vmax.f32 %v1109, 0.0
          %v1126 = vmax.f32 %v1110, 0.0
          %v1127 = vmax.f32 %v1111, 0.0
          %v1128 = vmax.f32 %v1112, 0.0
          %1129 = vst.msk [vmem:[%s416] sm:$0xff] %vm1076, %v1113
          %1130 = vst.msk [vmem:[%s416 + $0x8] sm:$0xff] %vm1076, %v1114
          %1131 = vst.msk [vmem:[%s416 + $0x10] sm:$0xff] %vm1076, %v1115
          %1132 = vst.msk [vmem:[%s416 + $0x18] sm:$0xff] %vm1076, %v1116
          %1133 = vst.msk [vmem:[%s416 + $0x20] sm:$0xff] %vm1076, %v1117
          %1134 = vst.msk [vmem:[%s416 + $0x28] sm:$0xff] %vm1076, %v1118
          %1135 = vst.msk [vmem:[%s416 + $0x30] sm:$0xff] %vm1076, %v1119
          %1136 = vst.msk [vmem:[%s416 + $0x38] sm:$0xff] %vm1076, %v1120
          %1137 = vst.msk [vmem:[%s416 + $0x40] sm:$0xff] %vm1076, %v1121
          %1138 = vst.msk [vmem:[%s416 + $0x48] sm:$0xff] %vm1076, %v1122
          %1139 = vst.msk [vmem:[%s416 + $0x50] sm:$0xff] %vm1076, %v1123
          %1140 = vst.msk [vmem:[%s416 + $0x58] sm:$0xff] %vm1076, %v1124
          %1141 = vst.msk [vmem:[%s416 + $0x60] sm:$0xff] %vm1076, %v1125
          %1142 = vst.msk [vmem:[%s416 + $0x68] sm:$0xff] %vm1076, %v1126
          %1143 = vst.msk [vmem:[%s416 + $0x70] sm:$0xff] %vm1076, %v1127
          %1144 = vst.msk [vmem:[%s416 + $0x78] sm:$0xff] %vm1076, %v1128
        $region93: #{tpu_custom_call.1} parent=80 // pred_fallthru
          _
        %s1145 = smul.u32 16, %s21
        %p1146 = scmp.lt.s32.totalorder %s1145, 47
        %s1147 = scalar_select %p1146, %s1145, 47
        %s1148 = smul.addr %s1147, 8
        %s1149 = scalar_lea.vmem %s6, %s1148
        // Predicated region
        $region94: #{tpu_custom_call.1} parent=80 // pred_check
          %p1150 = pneg %p190
        $region95: #{tpu_custom_call.1} parent=80 // pred_check_branch
          %1152 = sbr.rel (%p1150) target = $region97
        $region96: #{tpu_custom_call.1} parent=80 // pred_region
          %s1153 = smul.u32 16, %s21
        $region97: #{tpu_custom_call.1} parent=80 // pred_fallthru
          _
      $region81: #{tpu_custom_call.1} parent=5 // pred_fallthru
        _
      %p1154 = scmp.le.s32.totalorder 2, %s12
      // Predicated region
      $region98: #{tpu_custom_call.1} parent=5 // pred_check
        %p1155 = pneg %p1154
      $region99: #{tpu_custom_call.1} parent=5 // pred_check_branch
        %1157 = sbr.rel (%p1155) target = $region101
      $region100: #{tpu_custom_call.1} parent=5 // pred_region
        %s1158 = ssub.s32 %s12, 2
        // Predicated region
        $region102: #{tpu_custom_call.1} parent=100 // pred_check
          %p1159 = pneg %p196
        $region103: #{tpu_custom_call.1} parent=100 // pred_check_branch
          %1161 = sbr.rel (%p1159) target = $region105
        $region104: #{tpu_custom_call.1} parent=100 // pred_region
          %s1162 = smul.u32 16, %s23
          %p1163 = scmp.lt.s32.totalorder %s1162, 47
          %s1164 = scalar_select %p1163, %s1162, 47
          %s1165 = smul.addr %s1164, 8
          %s1166 = scalar_lea.vmem %s6, %s1165
        $region105: #{tpu_custom_call.1} parent=100 // pred_fallthru
          _
      $region101: #{tpu_custom_call.1} parent=5 // pred_fallthru
        _
    $region6: #{tpu_custom_call.1} parent=1 // loop_footer
      %s16 = sadd.s32 1, %s12
    $region7: #{tpu_custom_call.1} parent=1 // loop_footer_branch
      %11 = sbr.rel target = $region3
    $region8: #{tpu_custom_call.1} parent=1 // loop_exit
      _

</llo_original>
